<compile_context>
chip_gen: v7x
topology: tpu7x:2x2x1
jax: 0.10.0
libtpu: 0.0.40
codegen_flags: <defaults>
</compile_context>

<pallas_src>
import math

import jax
import jax.numpy as jnp
from jax.experimental import pallas as pl
from jax.experimental.pallas import tpu as pltpu

IN0 = 15   # f1 in_features
OUT0 = 8   # f1 out_features
IN1 = 10   # f2 in_features
OUT1 = 12  # f2 out_features


def _model_kernel(x0T_ref, x1T_ref, w1T_ref, b1_ref, w2T_ref, b2_ref, outT_ref):
    # x0T_ref : [IN0, TB]   activations (features on sublanes, batch on lanes)
    # x1T_ref : [IN1, TB]
    # w1T_ref : [OUT0, IN0] resident weight (already scaled by 1/6)
    # b1_ref  : [OUT0, 1]   resident bias   (already scaled by 1/6)
    # w2T_ref : [OUT0, IN1] resident gate weight (first 8 of f2's 12 outputs)
    # b2_ref  : [OUT0, 1]   resident gate bias   (already shifted by +3)
    # outT_ref: [OUT0, TB]  lane-dense output (batch on lanes)
    x0t = x0T_ref[...].astype(jnp.float32)
    x1t = x1T_ref[...].astype(jnp.float32)

    y1 = jnp.dot(w1T_ref[...], x0t,
                 preferred_element_type=jnp.float32) + b1_ref[...]
    gate = jnp.clip(
        jnp.dot(w2T_ref[...], x1t,
                preferred_element_type=jnp.float32) + b2_ref[...],
        0.0, 6.0)
    outT_ref[...] = (y1 * gate).astype(outT_ref.dtype)


def _model_forward(x0, x1, w1, b1, w2, b2, *, tb=32768):
    """x0:[B,15], x1:[B,10]; w1:[15,8], b1:[8]; w2:[10,12], b2:[12] -> [B,8]."""
    B = x0.shape[0]
    f32 = jnp.float32

    # --- constant folding at weight-prep time (negligible, done once) ---------
    #   out = (x0 @ (w1/6) + b1/6) * clip(x1 @ w2g + (b2g + 3), 0, 6)
    w1T = (w1.astype(f32) * (1.0 / 6.0)).T                       # [8, 15]
    b1c = (jnp.reshape(b1, (-1,)).astype(f32) * (1.0 / 6.0))[:, None]   # [8, 1]
    w2T = w2[:, :OUT0].astype(f32).T                             # [8, 10]
    b2c = (jnp.reshape(b2, (-1,))[:OUT0].astype(f32) + 3.0)[:, None]    # [8, 1]

    # --- lane-dense activations: batch on the 128-lane axis, native dtype -----
    x0T = x0.T                                                    # [15, B]
    x1T = x1.T                                                    # [10, B]

    if B <= tb:
        tb_eff = B                      # single block: block dims == array dims
    else:
        assert tb % 128 == 0, "tb must be a multiple of 128 for lane alignment"
        tb_eff = tb                     # Pallas masks the partial last block

    grid = (pl.cdiv(B, tb_eff),)
    act_bytes = x0.dtype.itemsize
    cost = pl.CostEstimate(
        flops=2 * B * OUT0 * (IN0 + IN1),
        transcendentals=0,
        bytes_accessed=(B * (IN0 + IN1) * act_bytes + B * OUT0 * 4
                        + 4 * (OUT0 * (IN0 + IN1) + 2 * OUT0)),
    )

    outT = pl.pallas_call(
        _model_kernel,
        out_shape=jax.ShapeDtypeStruct((OUT0, B), f32),
        grid=grid,
        in_specs=[
            pl.BlockSpec((IN0, tb_eff), lambda i: (0, i)),    # x0^T blocks
            pl.BlockSpec((IN1, tb_eff), lambda i: (0, i)),    # x1^T blocks
            pl.BlockSpec((OUT0, IN0), lambda i: (0, 0)),      # resident w1^T
            pl.BlockSpec((OUT0, 1), lambda i: (0, 0)),        # resident b1
            pl.BlockSpec((OUT0, IN1), lambda i: (0, 0)),      # resident w2^T
            pl.BlockSpec((OUT0, 1), lambda i: (0, 0)),        # resident b2
        ],
        out_specs=pl.BlockSpec((OUT0, tb_eff), lambda i: (0, i)),
        compiler_params=pltpu.CompilerParams(
            dimension_semantics=("parallel",),     # megacore-shard batch (v7x)
            vmem_limit_bytes=32 * 1024 * 1024,     # ~10 MiB used at tb=32768
        ),
        cost_estimate=cost,
    )(x0T, x1T, w1T, b1c, w2T, b2c)

    # Module contract is [B, OUT0]; this is only 8*B*4 bytes of layout plumbing.
    return outT.T


model_forward = jax.jit(_model_forward, static_argnames=("tb",))


def _init_params(key):
    # PyTorch-default-style init: U(-1/sqrt(fan_in), 1/sqrt(fan_in))
    k1, k2, k3, k4 = jax.random.split(key, 4)
    bound1 = 1.0 / math.sqrt(IN0)
    bound2 = 1.0 / math.sqrt(IN1)
    w1 = jax.random.uniform(k1, (IN0, OUT0), jnp.float32, -bound1, bound1)
    b1 = jax.random.uniform(k2, (OUT0,), jnp.float32, -bound1, bound1)
    w2 = jax.random.uniform(k3, (IN1, OUT1), jnp.float32, -bound2, bound2)
    b2 = jax.random.uniform(k4, (OUT1,), jnp.float32, -bound2, bound2)
    return w1, b1, w2, b2


if __name__ == "__main__":
    key = jax.random.PRNGKey(0)
    kp, kx0, kx1 = jax.random.split(key, 3)

    B = 8
    x0 = jax.random.normal(kx0, (B, IN0), jnp.float32)   # input0
    x1 = jax.random.normal(kx1, (B, IN1), jnp.float32)   # input1
    w1, b1, w2, b2 = _init_params(kp)

    out = model_forward(x0, x1, w1, b1, w2, b2)
    out = jax.block_until_ready(out)

    # Pure-JAX reference (same gate-slicing convention as the TODO above).
    y1_ref = x0 @ w1 + b1
    y2_ref = x1 @ w2 + b2
    ref = y1_ref * jnp.clip(y2_ref + 3.0, 0.0, 6.0)[:, :OUT0] / 6.0
    assert out.shape == (B, OUT0)
    assert jnp.allclose(out, ref, atol=1e-5, rtol=1e-5)

    print("KERNEL_OK")
</pallas_src>

<mosaic_0001>
module attributes {stable_mosaic.version = 11 : i64} {
  func.func @_model_kernel(%arg0: i32, %arg1: memref<15x8xf32, #tpu.memory_space<vmem>>, %arg2: memref<10x8xf32, #tpu.memory_space<vmem>>, %arg3: memref<8x15xf32, #tpu.memory_space<vmem>>, %arg4: memref<8x1xf32, #tpu.memory_space<vmem>>, %arg5: memref<8x10xf32, #tpu.memory_space<vmem>>, %arg6: memref<8x1xf32, #tpu.memory_space<vmem>>, %arg7: memref<8x8xf32, #tpu.memory_space<vmem>>) attributes {dimension_semantics = [#tpu.dimension_semantics<parallel>], iteration_bounds = array<i64: 1>, scalar_prefetch = 0 : i64, scratch_operands = 0 : i64, tpu.core_type = #tpu.core_type<tc>, window_params = [{transform_indices = @transform_0, window_bounds = array<i64: 15, 8>}, {transform_indices = @transform_1, window_bounds = array<i64: 10, 8>}, {pipeline_mode = #tpu.pipeline_mode<synchronous>, transform_indices = @transform_2, window_bounds = array<i64: 8, 15>}, {pipeline_mode = #tpu.pipeline_mode<synchronous>, transform_indices = @transform_3, window_bounds = array<i64: 8, 1>}, {pipeline_mode = #tpu.pipeline_mode<synchronous>, transform_indices = @transform_4, window_bounds = array<i64: 8, 10>}, {pipeline_mode = #tpu.pipeline_mode<synchronous>, transform_indices = @transform_5, window_bounds = array<i64: 8, 1>}, {transform_indices = @transform_6, window_bounds = array<i64: 8, 8>}]} {
    %c0 = arith.constant 0 : index
    %c0_0 = arith.constant 0 : index
    %0 = vector.load %arg1[%c0, %c0_0] : memref<15x8xf32, #tpu.memory_space<vmem>>, vector<15x8xf32>
    %c0_1 = arith.constant 0 : index
    %c0_2 = arith.constant 0 : index
    %1 = vector.load %arg2[%c0_1, %c0_2] : memref<10x8xf32, #tpu.memory_space<vmem>>, vector<10x8xf32>
    %c0_3 = arith.constant 0 : index
    %c0_4 = arith.constant 0 : index
    %2 = vector.load %arg3[%c0_3, %c0_4] : memref<8x15xf32, #tpu.memory_space<vmem>>, vector<8x15xf32>
    %cst = arith.constant dense<0.000000e+00> : vector<8x8xf32>
    %3 = tpu.matmul %2, %0, %cst {dimension_numbers = #tpu.dot_dimension_numbers<[1], [0], [0], [1], [0, 0, 1, 1], [], []>} : vector<8x15xf32>, vector<15x8xf32>, vector<8x8xf32> -> vector<8x8xf32>
    %c0_5 = arith.constant 0 : index
    %c0_6 = arith.constant 0 : index
    %4 = vector.load %arg4[%c0_5, %c0_6] : memref<8x1xf32, #tpu.memory_space<vmem>>, vector<8x1xf32>
    %5 = vector.broadcast %4 : vector<8x1xf32> to vector<8x8xf32>
    %6 = arith.addf %3, %5 : vector<8x8xf32>
    %c0_7 = arith.constant 0 : index
    %c0_8 = arith.constant 0 : index
    %7 = vector.load %arg5[%c0_7, %c0_8] : memref<8x10xf32, #tpu.memory_space<vmem>>, vector<8x10xf32>
    %cst_9 = arith.constant dense<0.000000e+00> : vector<8x8xf32>
    %8 = tpu.matmul %7, %1, %cst_9 {dimension_numbers = #tpu.dot_dimension_numbers<[1], [0], [0], [1], [0, 0, 1, 1], [], []>} : vector<8x10xf32>, vector<10x8xf32>, vector<8x8xf32> -> vector<8x8xf32>
    %c0_10 = arith.constant 0 : index
    %c0_11 = arith.constant 0 : index
    %9 = vector.load %arg6[%c0_10, %c0_11] : memref<8x1xf32, #tpu.memory_space<vmem>>, vector<8x1xf32>
    %10 = vector.broadcast %9 : vector<8x1xf32> to vector<8x8xf32>
    %11 = arith.addf %8, %10 : vector<8x8xf32>
    %cst_12 = arith.constant 0.000000e+00 : f32
    %cst_13 = arith.constant 6.000000e+00 : f32
    %12 = vector.broadcast %cst_12 : f32 to vector<8x8xf32>
    %13 = arith.maximumf %12, %11 : vector<8x8xf32>
    %14 = vector.broadcast %cst_13 : f32 to vector<8x8xf32>
    %15 = arith.minimumf %14, %13 : vector<8x8xf32>
    %16 = arith.mulf %6, %15 : vector<8x8xf32>
    %c0_14 = arith.constant 0 : index
    %c0_15 = arith.constant 0 : index
    %17 = vector.load %arg7[%c0_14, %c0_15] : memref<8x8xf32, #tpu.memory_space<vmem>>, vector<8x8xf32>
    tpu.vector_store %arg7[%c0_14, %c0_15], %16 {strides = array<i32>} : memref<8x8xf32, #tpu.memory_space<vmem>>, vector<8x8xf32>,
    return
  }
  func.func @transform_0(%arg0: i32) -> (i32, i32) {
    %c0_i32 = arith.constant 0 : i32
    %c0_i32_0 = arith.constant 0 : i32
    return %c0_i32, %arg0 : i32, i32
  }
  func.func @transform_1(%arg0: i32) -> (i32, i32) {
    %c0_i32 = arith.constant 0 : i32
    %c0_i32_0 = arith.constant 0 : i32
    return %c0_i32, %arg0 : i32, i32
  }
  func.func @transform_2(%arg0: i32) -> (i32, i32) {
    %c0_i32 = arith.constant 0 : i32
    %c0_i32_0 = arith.constant 0 : i32
    %c0_i32_1 = arith.constant 0 : i32
    return %c0_i32, %c0_i32_0 : i32, i32
  }
  func.func @transform_3(%arg0: i32) -> (i32, i32) {
    %c0_i32 = arith.constant 0 : i32
    %c0_i32_0 = arith.constant 0 : i32
    %c0_i32_1 = arith.constant 0 : i32
    return %c0_i32, %c0_i32_0 : i32, i32
  }
  func.func @transform_4(%arg0: i32) -> (i32, i32) {
    %c0_i32 = arith.constant 0 : i32
    %c0_i32_0 = arith.constant 0 : i32
    %c0_i32_1 = arith.constant 0 : i32
    return %c0_i32, %c0_i32_0 : i32, i32
  }
  func.func @transform_5(%arg0: i32) -> (i32, i32) {
    %c0_i32 = arith.constant 0 : i32
    %c0_i32_0 = arith.constant 0 : i32
    %c0_i32_1 = arith.constant 0 : i32
    return %c0_i32, %c0_i32_0 : i32, i32
  }
  func.func @transform_6(%arg0: i32) -> (i32, i32) {
    %c0_i32 = arith.constant 0 : i32
    %c0_i32_0 = arith.constant 0 : i32
    return %c0_i32, %arg0 : i32, i32
  }
}

</mosaic_0001>

<llo_original>
// kernel: _model_forward.1
$region0: #{_model_forward.1}
  #allocation0 [shape = 'u32[]', space=smem, size = 0x4, offset = 0x4, fixed_abs, tag = 'smem constant byte address 0x4 - core index']
  #allocation1 [shape = 'u32[144,128]{1,0:T(1,128)}', space=vmem, size = 0x12000, scoped, tag = 'internal scratch']
  %s0 = inlined_call_operand.vmem [shape: f32[15,8], index: 0, kind: input, shape index: {}]
  %s1 = inlined_call_operand.vmem [shape: f32[10,8], index: 1, kind: input, shape index: {}]
  %s2 = inlined_call_operand.vmem [shape: f32[8,15], index: 2, kind: input, shape index: {}]
  %s3 = inlined_call_operand.vmem [shape: f32[8,1], index: 3, kind: input, shape index: {}]
  %s4 = inlined_call_operand.vmem [shape: f32[8,10], index: 4, kind: input, shape index: {}]
  %s5 = inlined_call_operand.vmem [shape: f32[8,1], index: 5, kind: input, shape index: {}]
  %s6 = inlined_call_operand.vmem [shape: f32[8,8], index: 6, kind: output, shape index: {}]
  %s7 = sld [smem:[#allocation0]]
  $region34: #{_model_forward.1} parent=0
    _
  %s9 = ssub.s32 1, %s7
  %s10 = scalar_select 0, %s9, %s7
  // Predicated region
  $region2: #{_model_forward.1} parent=0 // pred_check
    _
  $region3: #{_model_forward.1} parent=0 // pred_check_branch
    %12 = sbr.rel (0) target = $region5
  $region4: #{_model_forward.1} parent=0 // pred_region
    _
  $region5: #{_model_forward.1} parent=0 // pred_fallthru
    _
  // Predicated region
  $region6: #{_model_forward.1} parent=0 // pred_check
    _
  $region7: #{_model_forward.1} parent=0 // pred_check_branch
    %14 = sbr.rel (0) target = $region9
  $region8: #{_model_forward.1} parent=0 // pred_region
    _
  $region9: #{_model_forward.1} parent=0 // pred_fallthru
    _
  // Predicated region
  $region10: #{_model_forward.1} parent=0 // pred_check
    _
  $region11: #{_model_forward.1} parent=0 // pred_check_branch
    %16 = sbr.rel (0) target = $region13
  $region12: #{_model_forward.1} parent=0 // pred_region
    _
  $region13: #{_model_forward.1} parent=0 // pred_fallthru
    _
  // Predicated region
  $region14: #{_model_forward.1} parent=0 // pred_check
    _
  $region15: #{_model_forward.1} parent=0 // pred_check_branch
    %18 = sbr.rel (0) target = $region17
  $region16: #{_model_forward.1} parent=0 // pred_region
    _
  $region17: #{_model_forward.1} parent=0 // pred_fallthru
    _
  // Predicated region
  $region18: #{_model_forward.1} parent=0 // pred_check
    _
  $region19: #{_model_forward.1} parent=0 // pred_check_branch
    %20 = sbr.rel (0) target = $region21
  $region20: #{_model_forward.1} parent=0 // pred_region
    _
  $region21: #{_model_forward.1} parent=0 // pred_fallthru
    _
  // Predicated region
  $region22: #{_model_forward.1} parent=0 // pred_check
    _
  $region23: #{_model_forward.1} parent=0 // pred_check_branch
    %22 = sbr.rel (0) target = $region25
  $region24: #{_model_forward.1} parent=0 // pred_region
    _
  $region25: #{_model_forward.1} parent=0 // pred_fallthru
    _
  %v23 = vld [vmem:[%s0] sm:$0xff]
  %v24 = vld [vmem:[%s0 + $0x8] sm:$0x7f]
  %v25 = vld [vmem:[%s1] sm:$0xff]
  %v26 = vld [vmem:[%s1 + $0x8] sm:$0x3]
  %v27 = vld [vmem:[%s2] sm:$0xff]
  %v28 = vld [vmem:[%s3] sm:$0xff]
  %30 = vset.pattern.permute.xlu0 0
  %31 = vperm.xlu0 %30, %v28
  %v32 = vpop.permute.xlu0 %31
  %vm34 = vcmask 121856
  %v36 = vsel %vm34, %v27, 0
  %vm38 = vcmask 1046528
  %v40 = vsel %vm38, %v24, 0
  %42 = vmatprep.subr.mxu0 0.0
  %43 = vmatpush1.msra.mxu0 %v23
  %44 = vmatprep.subr.mxu0 0.0
  %45 = vmatpush1.msra.mxu0 %v40
  %46 = vmatprep.subr.mxu0 0.0
  %47 = vmatpush1.msra.mxu0 0.0
  %48 = vmatprep.subr.mxu0 0.0
  %49 = vmatpush1.msra.mxu0 0.0
  %50 = vmatprep.subr.mxu0 0.0
  %51 = vmatpush1.msra.mxu0 0.0
  %52 = vmatprep.subr.mxu0 0.0
  %53 = vmatpush1.msra.mxu0 0.0
  %54 = vmatprep.subr.mxu0 0.0
  %55 = vmatpush1.msra.mxu0 0.0
  %56 = vmatprep.subr.mxu0 0.0
  %57 = vmatpush1.msra.mxu0 0.0
  %58 = vmatprep.subr.mxu0 0.0
  %59 = vmatpush1.msra.mxu0 0.0
  %60 = vmatprep.subr.mxu0 0.0
  %61 = vmatpush1.msra.mxu0 0.0
  %62 = vmatprep.subr.mxu0 0.0
  %63 = vmatpush1.msra.mxu0 0.0
  %64 = vmatprep.subr.mxu0 0.0
  %65 = vmatpush1.msra.mxu0 0.0
  %66 = vmatprep.subr.mxu0 0.0
  %67 = vmatpush1.msra.mxu0 0.0
  %68 = vmatprep.subr.mxu0 0.0
  %69 = vmatpush1.msra.mxu0 0.0
  %70 = vmatprep.subr.mxu0 0.0
  %71 = vmatpush1.msra.mxu0 0.0
  %72 = vmatprep.subr.mxu0 0.0
  %73 = vmatpush1.msra.mxu0 0.0
  %74 = vmatprep.subr.mxu0 0.0
  %75 = vmatpush1.msra.mxu0 0.0
  %76 = vmatprep.subr.mxu0 0.0
  %77 = vmatpush1.msra.mxu0 0.0
  %78 = vmatprep.subr.mxu0 0.0
  %79 = vmatpush1.msra.mxu0 0.0
  %80 = vmatprep.subr.mxu0 0.0
  %81 = vmatpush1.msra.mxu0 0.0
  %82 = vmatprep.subr.mxu0 0.0
  %83 = vmatpush1.msra.mxu0 0.0
  %84 = vmatprep.subr.mxu0 0.0
  %85 = vmatpush1.msra.mxu0 0.0
  %86 = vmatprep.subr.mxu0 0.0
  %87 = vmatpush1.msra.mxu0 0.0
  %88 = vmatprep.subr.mxu0 0.0
  %89 = vmatpush1.msra.mxu0 0.0
  %90 = vmatprep.subr.mxu0 0.0
  %91 = vmatpush1.msra.mxu0 0.0
  %92 = vmatprep.subr.mxu0 0.0
  %93 = vmatpush1.msra.mxu0 0.0
  %94 = vmatprep.subr.mxu0 0.0
  %95 = vmatpush1.msra.mxu0 0.0
  %96 = vmatprep.subr.mxu0 0.0
  %97 = vmatpush1.msra.mxu0 0.0
  %98 = vmatprep.subr.mxu0 0.0
  %99 = vmatpush1.msra.mxu0 0.0
  %100 = vmatprep.subr.mxu0 0.0
  %101 = vmatpush1.msra.mxu0 0.0
  %102 = vmatprep.subr.mxu0 0.0
  %103 = vmatpush1.msra.mxu0 0.0
  %104 = vmatprep.subr.mxu0 0.0
  %105 = vmatpush1.msra.mxu0 0.0
  %106 = vmatprep.mubr.f32.mxu0 0.0
  %107 = vmatmul.mubr.f32.gmra.mrb[0].mxu0 %v36
  %v108 = vpop.f32.mrb[0].mxu0
  %v109 = vadd.f32 %v32, %v108
  %v110 = vpop.f32.mrb[0].mxu0
  %111 = vdwg.mxu0
  %v112 = vld [vmem:[%s4] sm:$0xff]
  %v113 = vld [vmem:[%s5] sm:$0xff]
  %115 = vset.pattern.permute.xlu0 0
  %116 = vperm.xlu0 %115, %v113
  %v117 = vpop.permute.xlu0 %116
  %vm119 = vcmask 80896
  %v121 = vsel %vm119, %v112, 0
  %vm123 = vcmask 1041408
  %v125 = vsel %vm123, %v26, 0
  %127 = vmatprep.subr.mxu0 0.0
  %128 = vmatpush1.msra.mxu0 %v25
  %129 = vmatprep.subr.mxu0 0.0
  %130 = vmatpush1.msra.mxu0 %v125
  %131 = vmatprep.subr.mxu0 0.0
  %132 = vmatpush1.msra.mxu0 0.0
  %133 = vmatprep.subr.mxu0 0.0
  %134 = vmatpush1.msra.mxu0 0.0
  %135 = vmatprep.subr.mxu0 0.0
  %136 = vmatpush1.msra.mxu0 0.0
  %137 = vmatprep.subr.mxu0 0.0
  %138 = vmatpush1.msra.mxu0 0.0
  %139 = vmatprep.subr.mxu0 0.0
  %140 = vmatpush1.msra.mxu0 0.0
  %141 = vmatprep.subr.mxu0 0.0
  %142 = vmatpush1.msra.mxu0 0.0
  %143 = vmatprep.subr.mxu0 0.0
  %144 = vmatpush1.msra.mxu0 0.0
  %145 = vmatprep.subr.mxu0 0.0
  %146 = vmatpush1.msra.mxu0 0.0
  %147 = vmatprep.subr.mxu0 0.0
  %148 = vmatpush1.msra.mxu0 0.0
  %149 = vmatprep.subr.mxu0 0.0
  %150 = vmatpush1.msra.mxu0 0.0
  %151 = vmatprep.subr.mxu0 0.0
  %152 = vmatpush1.msra.mxu0 0.0
  %153 = vmatprep.subr.mxu0 0.0
  %154 = vmatpush1.msra.mxu0 0.0
  %155 = vmatprep.subr.mxu0 0.0
  %156 = vmatpush1.msra.mxu0 0.0
  %157 = vmatprep.subr.mxu0 0.0
  %158 = vmatpush1.msra.mxu0 0.0
  %159 = vmatprep.subr.mxu0 0.0
  %160 = vmatpush1.msra.mxu0 0.0
  %161 = vmatprep.subr.mxu0 0.0
  %162 = vmatpush1.msra.mxu0 0.0
  %163 = vmatprep.subr.mxu0 0.0
  %164 = vmatpush1.msra.mxu0 0.0
  %165 = vmatprep.subr.mxu0 0.0
  %166 = vmatpush1.msra.mxu0 0.0
  %167 = vmatprep.subr.mxu0 0.0
  %168 = vmatpush1.msra.mxu0 0.0
  %169 = vmatprep.subr.mxu0 0.0
  %170 = vmatpush1.msra.mxu0 0.0
  %171 = vmatprep.subr.mxu0 0.0
  %172 = vmatpush1.msra.mxu0 0.0
  %173 = vmatprep.subr.mxu0 0.0
  %174 = vmatpush1.msra.mxu0 0.0
  %175 = vmatprep.subr.mxu0 0.0
  %176 = vmatpush1.msra.mxu0 0.0
  %177 = vmatprep.subr.mxu0 0.0
  %178 = vmatpush1.msra.mxu0 0.0
  %179 = vmatprep.subr.mxu0 0.0
  %180 = vmatpush1.msra.mxu0 0.0
  %181 = vmatprep.subr.mxu0 0.0
  %182 = vmatpush1.msra.mxu0 0.0
  %183 = vmatprep.subr.mxu0 0.0
  %184 = vmatpush1.msra.mxu0 0.0
  %185 = vmatprep.subr.mxu0 0.0
  %186 = vmatpush1.msra.mxu0 0.0
  %187 = vmatprep.subr.mxu0 0.0
  %188 = vmatpush1.msra.mxu0 0.0
  %189 = vmatprep.subr.mxu0 0.0
  %190 = vmatpush1.msra.mxu0 0.0
  %191 = vmatprep.mubr.f32.mxu0 0.0
  %192 = vmatmul.mubr.f32.gmra.mrb[0].mxu0 %v121
  %v193 = vpop.f32.mrb[0].mxu0
  %v194 = vadd.f32 %v117, %v193
  %v195 = vpop.f32.mrb[0].mxu0
  %196 = vdwg.mxu0
  %v197 = vmax.f32 %v194, 0.0
  %v198 = vmin.f32 %v197, 6.0
  %v199 = vmul.f32 %v109, %v198
  %vm200 = vcmask 64512
  %201 = vst.msk [vmem:[%s6] sm:$0xff] %vm200, %v199
  // Predicated region
  $region26: #{_model_forward.1} parent=0 // pred_check
    _
  $region27: #{_model_forward.1} parent=0 // pred_check_branch
    %203 = sbr.rel (0) target = $region29
  $region28: #{_model_forward.1} parent=0 // pred_region
    _
  $region29: #{_model_forward.1} parent=0 // pred_fallthru
    _
  // Predicated region
  $region30: #{_model_forward.1} parent=0 // pred_check
    _
  $region31: #{_model_forward.1} parent=0 // pred_check_branch
    %205 = sbr.rel (0) target = $region33
  $region32: #{_model_forward.1} parent=0 // pred_region
    _
  $region33: #{_model_forward.1} parent=0 // pred_fallthru
    _

</llo_original>
